<compile_context>
chip_gen: v7x
topology: tpu7x:2x2x1
jax: 0.10.0
libtpu: 0.0.40
codegen_flags: <defaults>
</compile_context>

<pallas_src>
import functools

import jax
import jax.numpy as jnp
from jax.experimental import pallas as pl
from jax.experimental.pallas import tpu as pltpu


def _round_up(x: int, m: int) -> int:
    return ((x + m - 1) // m) * m


def _triplet_loss_kernel(a_ref, p_ref, ng_ref, o_ref, acc_ref, *,
                         margin, n_valid, n_padded, size_average):
    i = pl.program_id(0)

    @pl.when(i == 0)
    def _init():
        acc_ref[0, 0] = jnp.float32(0.0)

    # Upcast on registers only (inputs may be bf16 etc.).
    a = a_ref[...].astype(jnp.float32)
    p = p_ref[...].astype(jnp.float32)
    ng = ng_ref[...].astype(jnp.float32)

    dp = a - p
    dn = a - ng
    dist_pos = jnp.sum(dp * dp, axis=1, keepdims=True)   # (block_n, 1)
    dist_neg = jnp.sum(dn * dn, axis=1, keepdims=True)   # (block_n, 1)
    losses = jnp.maximum(dist_pos - dist_neg + jnp.float32(margin),
                         jnp.float32(0.0))               # (block_n, 1)

    block_n = a.shape[0]
    if n_padded != n_valid:
        # Zero out the contribution of padding rows.
        row = i * block_n + jax.lax.broadcasted_iota(jnp.int32, (block_n, 1), 0)
        losses = jnp.where(row < n_valid, losses, jnp.float32(0.0))

    acc_ref[0, 0] += jnp.sum(losses)

    @pl.when(i == pl.num_programs(0) - 1)
    def _finalize():
        total = acc_ref[0, 0]
        if size_average:
            total = total / jnp.float32(n_valid)
        o_ref[0, 0] = total


def triplet_loss(anchor, positive, negative, *, margin, size_average=True,
                 tile_n=1024):
    """Pallas TPU TripletLoss.

    anchor/positive/negative: (N, D) embeddings (any float dtype).
    Returns a scalar: mean (size_average=True) or sum of
    relu(||a-p||^2 - ||a-n||^2 + margin) over the batch.
    """
    n, d = anchor.shape
    assert positive.shape == (n, d) and negative.shape == (n, d)

    # Tile the batch dimension; keep sublane alignment (multiple of 8).
    block_n = min(_round_up(tile_n, 8), _round_up(n, 8))
    n_pad = _round_up(n, block_n)
    if n_pad != n:
        pad = ((0, n_pad - n), (0, 0))
        anchor = jnp.pad(anchor, pad)
        positive = jnp.pad(positive, pad)
        negative = jnp.pad(negative, pad)

    grid = (n_pad // block_n,)
    elt = jnp.dtype(anchor.dtype).itemsize

    kernel = functools.partial(
        _triplet_loss_kernel,
        margin=float(margin),
        n_valid=n,
        n_padded=n_pad,
        size_average=bool(size_average),
    )

    out = pl.pallas_call(
        kernel,
        out_shape=jax.ShapeDtypeStruct((1, 1), jnp.float32),
        grid=grid,
        in_specs=[
            pl.BlockSpec((block_n, d), lambda i: (i, 0)),
            pl.BlockSpec((block_n, d), lambda i: (i, 0)),
            pl.BlockSpec((block_n, d), lambda i: (i, 0)),
        ],
        # Scalar result in SMEM: avoids a padded (8,128) VMEM tile and a
        # lane-sparse masked store.
        out_specs=pl.BlockSpec(memory_space=pltpu.MemorySpace.SMEM),
        scratch_shapes=[pltpu.SMEM((1, 1), jnp.float32)],
        compiler_params=pltpu.CompilerParams(
            # Single grid axis carries the running-sum accumulator.
            dimension_semantics=("arbitrary",),
            # Raise the scoped-VMEM cap (v5e default is only 16 MiB) while
            # staying within v7x's 64 MiB physical VMEM.
            vmem_limit_bytes=32 * 1024 * 1024,
        ),
        cost_estimate=pl.CostEstimate(
            flops=8 * n * d,          # 2 subs, 2 squares, 2 row-sums, cmp/add
            transcendentals=0,
            bytes_accessed=3 * n * d * elt + 4,
        ),
    )(anchor, positive, negative)
    return out[0, 0]


if __name__ == "__main__":
    key = jax.random.PRNGKey(0)
    ka, kp, kn = jax.random.split(key, 3)

    # Small embedding shapes consistent with the module:
    # batch of 20 triplets, embedding dim 32.
    N, D = 20, 32
    margin = 1.0

    anchor = jax.random.normal(ka, (N, D), dtype=jnp.float32)
    positive = anchor + 0.1 * jax.random.normal(kp, (N, D), dtype=jnp.float32)
    negative = jax.random.normal(kn, (N, D), dtype=jnp.float32)

    # Use a small tile (8) so this toy run exercises multi-step accumulation
    # and padding/masking (20 rows -> 3 tiles of 8 with 4 masked rows).
    loss = triplet_loss(anchor, positive, negative, margin=margin,
                        size_average=True, tile_n=8)
    jax.block_until_ready(loss)

    # Reference (plain JAX) mirroring the PyTorch forward.
    dist_pos = jnp.sum((anchor - positive) ** 2, axis=1)
    dist_neg = jnp.sum((anchor - negative) ** 2, axis=1)
    per_ex = jnp.maximum(dist_pos - dist_neg + margin, 0.0)
    ref_mean = jnp.mean(per_ex)
    assert jnp.allclose(loss, ref_mean, atol=1e-5, rtol=1e-5), (loss, ref_mean)

    # size_average=False path (sum reduction).
    loss_sum = triplet_loss(anchor, positive, negative, margin=margin,
                            size_average=False, tile_n=8)
    jax.block_until_ready(loss_sum)
    ref_sum = jnp.sum(per_ex)
    assert jnp.allclose(loss_sum, ref_sum, atol=1e-4, rtol=1e-5), (loss_sum, ref_sum)

    print("KERNEL_OK")
</pallas_src>

<mosaic_0001>
module attributes {stable_mosaic.version = 11 : i64} {
  func.func @_triplet_loss_kernel(%arg0: i32, %arg1: memref<8x32xf32, #tpu.memory_space<vmem>>, %arg2: memref<8x32xf32, #tpu.memory_space<vmem>>, %arg3: memref<8x32xf32, #tpu.memory_space<vmem>>, %arg4: memref<1x1xf32, #tpu.memory_space<smem>>, %arg5: memref<1x1xf32, #tpu.memory_space<smem>>) attributes {dimension_semantics = [#tpu.dimension_semantics<arbitrary>], iteration_bounds = array<i64: 3>, scalar_prefetch = 0 : i64, scratch_operands = 1 : i64, tpu.core_type = #tpu.core_type<tc>, window_params = [{transform_indices = @transform_0, window_bounds = array<i64: 8, 32>}, {transform_indices = @transform_1, window_bounds = array<i64: 8, 32>}, {transform_indices = @transform_2, window_bounds = array<i64: 8, 32>}, {transform_indices = @transform_3, window_bounds = array<i64: 1, 1>}]} {
    %c0_i32 = arith.constant 0 : i32
    %0 = arith.cmpi eq, %arg0, %c0_i32 : i32
    %1 = arith.extui %0 : i1 to i32
    %c0_i32_0 = arith.constant 0 : i32
    %2 = arith.cmpi ne, %1, %c0_i32_0 : i32
    scf.if %2 {
      %cst_16 = arith.constant 0.000000e+00 : f32
      %c0_17 = arith.constant 0 : index
      %c0_18 = arith.constant 0 : index
      %37 = memref.load %arg5[%c0_17, %c0_18] : memref<1x1xf32, #tpu.memory_space<smem>>
      memref.store %cst_16, %arg5[%c0_17, %c0_18] : memref<1x1xf32, #tpu.memory_space<smem>>
    } else {
    }
    %c0 = arith.constant 0 : index
    %c0_1 = arith.constant 0 : index
    %3 = vector.load %arg1[%c0, %c0_1] : memref<8x32xf32, #tpu.memory_space<vmem>>, vector<8x32xf32>
    %c0_2 = arith.constant 0 : index
    %c0_3 = arith.constant 0 : index
    %4 = vector.load %arg2[%c0_2, %c0_3] : memref<8x32xf32, #tpu.memory_space<vmem>>, vector<8x32xf32>
    %c0_4 = arith.constant 0 : index
    %c0_5 = arith.constant 0 : index
    %5 = vector.load %arg3[%c0_4, %c0_5] : memref<8x32xf32, #tpu.memory_space<vmem>>, vector<8x32xf32>
    %6 = arith.subf %3, %4 : vector<8x32xf32>
    %7 = arith.subf %3, %5 : vector<8x32xf32>
    %8 = arith.mulf %6, %6 : vector<8x32xf32>
    %cst = arith.constant dense<0.000000e+00> : vector<8xf32>
    %9 = vector.multi_reduction <add>, %8, %cst [1] : vector<8x32xf32> to vector<8xf32>
    %10 = vector.shape_cast %9 : vector<8xf32> to vector<8x1xf32>
    %11 = arith.mulf %7, %7 : vector<8x32xf32>
    %cst_6 = arith.constant dense<0.000000e+00> : vector<8xf32>
    %12 = vector.multi_reduction <add>, %11, %cst_6 [1] : vector<8x32xf32> to vector<8xf32>
    %13 = vector.shape_cast %12 : vector<8xf32> to vector<8x1xf32>
    %14 = arith.subf %10, %13 : vector<8x1xf32>
    %cst_7 = arith.constant 1.000000e+00 : f32
    %15 = vector.broadcast %cst_7 : f32 to vector<8x1xf32>
    %16 = arith.addf %14, %15 : vector<8x1xf32>
    %cst_8 = arith.constant 0.000000e+00 : f32
    %17 = vector.broadcast %cst_8 : f32 to vector<8x1xf32>
    %18 = arith.maximumf %16, %17 : vector<8x1xf32>
    %c8_i32 = arith.constant 8 : i32
    %19 = arith.muli %arg0, %c8_i32 : i32
    %20 = tpu.iota {dimensions = array<i32: 0>} : vector<8x1xi32>
    %21 = vector.broadcast %19 : i32 to vector<8x1xi32>
    %22 = arith.addi %21, %20 : vector<8x1xi32>
    %c20_i32 = arith.constant 20 : i32
    %23 = vector.broadcast %c20_i32 : i32 to vector<8x1xi32>
    %24 = arith.cmpi slt, %22, %23 : vector<8x1xi32>
    %cst_9 = arith.constant 0.000000e+00 : f32
    %25 = vector.broadcast %cst_9 : f32 to vector<8x1xf32>
    %26 = arith.select %24, %18, %25 : vector<8x1xi1>, vector<8x1xf32>
    %c0_10 = arith.constant 0 : index
    %c0_11 = arith.constant 0 : index
    %27 = memref.load %arg5[%c0_10, %c0_11] : memref<1x1xf32, #tpu.memory_space<smem>>
    %28 = vector.shape_cast %26 : vector<8x1xf32> to vector<1x8x1xf32>
    %cst_12 = arith.constant dense<0.000000e+00> : vector<1xf32>
    %29 = vector.multi_reduction <add>, %28, %cst_12 [1, 2] : vector<1x8x1xf32> to vector<1xf32>
    %30 = vector.shape_cast %29 : vector<1xf32> to vector<1x1x1xf32>
    %31 = vector.extract %30[0, 0, 0] : f32 from vector<1x1x1xf32>
    %32 = arith.addf %27, %31 : f32
    %c0_13 = arith.constant 0 : index
    %c0_14 = arith.constant 0 : index
    %33 = memref.load %arg5[%c0_13, %c0_14] : memref<1x1xf32, #tpu.memory_space<smem>>
    memref.store %32, %arg5[%c0_13, %c0_14] : memref<1x1xf32, #tpu.memory_space<smem>>
    %c2_i32 = arith.constant 2 : i32
    %34 = arith.cmpi eq, %arg0, %c2_i32 : i32
    %35 = arith.extui %34 : i1 to i32
    %c0_i32_15 = arith.constant 0 : i32
    %36 = arith.cmpi ne, %35, %c0_i32_15 : i32
    scf.if %36 {
      %c0_16 = arith.constant 0 : index
      %c0_17 = arith.constant 0 : index
      %37 = memref.load %arg5[%c0_16, %c0_17] : memref<1x1xf32, #tpu.memory_space<smem>>
      %cst_18 = arith.constant 2.000000e+01 : f32
      %38 = arith.divf %37, %cst_18 : f32
      %c0_19 = arith.constant 0 : index
      %c0_20 = arith.constant 0 : index
      %39 = memref.load %arg4[%c0_19, %c0_20] : memref<1x1xf32, #tpu.memory_space<smem>>
      memref.store %38, %arg4[%c0_19, %c0_20] : memref<1x1xf32, #tpu.memory_space<smem>>
    } else {
    }
    return
  }
  func.func @transform_0(%arg0: i32) -> (i32, i32) {
    %c0_i32 = arith.constant 0 : i32
    %c0_i32_0 = arith.constant 0 : i32
    return %arg0, %c0_i32 : i32, i32
  }
  func.func @transform_1(%arg0: i32) -> (i32, i32) {
    %c0_i32 = arith.constant 0 : i32
    %c0_i32_0 = arith.constant 0 : i32
    return %arg0, %c0_i32 : i32, i32
  }
  func.func @transform_2(%arg0: i32) -> (i32, i32) {
    %c0_i32 = arith.constant 0 : i32
    %c0_i32_0 = arith.constant 0 : i32
    return %arg0, %c0_i32 : i32, i32
  }
  func.func @transform_3(%arg0: i32) -> (i32, i32) {
    %c0_i32 = arith.constant 0 : i32
    %c0_i32_0 = arith.constant 0 : i32
    %c0_i32_1 = arith.constant 0 : i32
    return %c0_i32, %c0_i32_0 : i32, i32
  }
}

</mosaic_0001>

<llo_original>
// kernel: tpu_custom_call.1
$region0: #{tpu_custom_call.1}
  #allocation0 [shape = 'u32[]', space=smem, size = 0x4, offset = 0x4, fixed_abs, tag = 'smem constant byte address 0x4 - core index']
  #allocation1 [shape = 'u32[144,128]{1,0:T(1,128)}', space=vmem, size = 0x12000, scoped, tag = 'internal scratch']
  #allocation2 [shape = 'f32[1,1]{1,0:T(1,128)}', space=smem, size = 0x200, scoped, tag = 'scratch operand']
  %s0 = inlined_call_operand.hbm [shape: f32[24,32], index: 0, kind: input, shape index: {}]
  %s1 = inlined_call_operand.hbm [shape: f32[24,32], index: 1, kind: input, shape index: {}]
  %s2 = inlined_call_operand.hbm [shape: f32[24,32], index: 2, kind: input, shape index: {}]
  %s3 = inlined_call_operand.hbm [shape: f32[1,1], index: 3, kind: output, shape index: {}]
  %s4 = sld [smem:[#allocation0]]
  $region65: #{tpu_custom_call.1} parent=0
    _
  %s6 = ssub.s32 1, %s4
  %s7 = scalar_select 0, %s6, %s4
  $region1: #{tpu_custom_call.1} parent=0
    #allocation3 [shape = 'u8[8192]{0}', space=vmem, size = 0x2000, scoped, tag = 'input window, operand 0']
    #allocation4 [shape = 's32[2]{0}', space=sflag, size = 0x8, scoped, tag = 'scoped memory for tpu_custom_call.1']
    #allocation5 [shape = 's32[2]{0}', space=sflag, size = 0x8, scoped, tag = 'scoped memory for tpu_custom_call.1']
    #allocation6 [shape = 'u8[8192]{0}', space=vmem, size = 0x2000, scoped, tag = 'input window, operand 1']
    #allocation7 [shape = 's32[2]{0}', space=sflag, size = 0x8, scoped, tag = 'scoped memory for tpu_custom_call.1']
    #allocation8 [shape = 'u8[8192]{0}', space=vmem, size = 0x2000, scoped, tag = 'input window, operand 2']
    #allocation9 [shape = 'u8[512]{0}', space=smem, size = 0x200, scoped, tag = 'output window, operand 0, single buffered']
    %8 = vsyncpa [#allocation4], 0
    %s9 = scalar_lea.sflag [#allocation4], 1
    %10 = vsyncpa %s9, 0
    %11 = vsyncpa [#allocation7], 0
    %s12 = scalar_lea.sflag [#allocation7], 1
    %13 = vsyncpa %s12, 0
    %14 = vsyncpa [#allocation5], 0
    loop: start=0, step=1, limit=5
    $region2: #{tpu_custom_call.1} parent=1 // loop_pre_header
      _
    $region3: #{tpu_custom_call.1} parent=1 // loop_header
      %s16 = sphi 0, %s20
      %p17 = scmp.ge.s32.totalorder %s16, 5
      %s26 = sphi 0, %s28
      %s29 = sphi 0, %s26
      %s30 = sphi 0, %s29
      %s46 = sphi 0, %s30
      %s52 = sphi 0, %s54
      %s55 = sphi 0, %s52
      %s56 = sphi 0, %s55
      %s72 = sphi 0, %s56
      %s78 = sphi 0, %s80
      %s81 = sphi 0, %s78
      %s82 = sphi 0, %s81
      %s98 = sphi 0, %s82
      %s102 = sphi 0, %s102
      %s104 = sphi 0, %s102
      %s105 = sphi 0, %s104
      %s119 = sphi 0, %s105
    $region4: #{tpu_custom_call.1} parent=1 // loop_header_branch
      %19 = sbr.rel (%p17) target = $region8
    $region5: #{tpu_custom_call.1} parent=1 // loop_body
      %s21 = ssub.s32 %s16, 1
      %s22 = ssub.s32 %s16, 2
      %s23 = sadd.s32 %s16, 1
      %s24 = ssub.s32 %s16, %s23
      %p25 = scmp.eq.s32.totalorder %s24, 0
      %s27 = sadd.s32 %s26, 1
      %s28 = scalar_select %p25, %s26, %s27
      %p31 = pneg %p25
      %p32 = scmp.eq.s32.totalorder %s16, 2
      %p33 = por %p31, %p32
      %p34 = scmp.ne.s32.totalorder %s26, %s29
      %p35 = scmp.eq.s32.totalorder %s16, 0
      %p36 = por %p34, %p35
      %p37 = scmp.ne.s32.totalorder %s26, %s29
      %p38 = scmp.eq.s32.totalorder %s21, 2
      %p39 = por %p37, %p38
      %p40 = scmp.ne.s32.totalorder %s29, %s30
      %p41 = scmp.eq.s32.totalorder %s21, 0
      %p42 = por %p40, %p41
      %p43 = scmp.ne.s32.totalorder %s29, %s30
      %p44 = scmp.eq.s32.totalorder %s22, 2
      %p45 = por %p43, %p44
      %p47 = scmp.ne.s32.totalorder %s30, %s46
      %p48 = scmp.eq.s32.totalorder %s22, 0
      %p49 = por %p47, %p48
      %s50 = ssub.s32 %s16, %s23
      %p51 = scmp.eq.s32.totalorder %s50, 0
      %s53 = sadd.s32 %s52, 1
      %s54 = scalar_select %p51, %s52, %s53
      %p57 = pneg %p51
      %p58 = scmp.eq.s32.totalorder %s16, 2
      %p59 = por %p57, %p58
      %p60 = scmp.ne.s32.totalorder %s52, %s55
      %p61 = scmp.eq.s32.totalorder %s16, 0
      %p62 = por %p60, %p61
      %p63 = scmp.ne.s32.totalorder %s52, %s55
      %p64 = scmp.eq.s32.totalorder %s21, 2
      %p65 = por %p63, %p64
      %p66 = scmp.ne.s32.totalorder %s55, %s56
      %p67 = scmp.eq.s32.totalorder %s21, 0
      %p68 = por %p66, %p67
      %p69 = scmp.ne.s32.totalorder %s55, %s56
      %p70 = scmp.eq.s32.totalorder %s22, 2
      %p71 = por %p69, %p70
      %p73 = scmp.ne.s32.totalorder %s56, %s72
      %p74 = scmp.eq.s32.totalorder %s22, 0
      %p75 = por %p73, %p74
      %s76 = ssub.s32 %s16, %s23
      %p77 = scmp.eq.s32.totalorder %s76, 0
      %s79 = sadd.s32 %s78, 1
      %s80 = scalar_select %p77, %s78, %s79
      %p83 = pneg %p77
      %p84 = scmp.eq.s32.totalorder %s16, 2
      %p85 = por %p83, %p84
      %p86 = scmp.ne.s32.totalorder %s78, %s81
      %p87 = scmp.eq.s32.totalorder %s16, 0
      %p88 = por %p86, %p87
      %p89 = scmp.ne.s32.totalorder %s78, %s81
      %p90 = scmp.eq.s32.totalorder %s21, 2
      %p91 = por %p89, %p90
      %p92 = scmp.ne.s32.totalorder %s81, %s82
      %p93 = scmp.eq.s32.totalorder %s21, 0
      %p94 = por %p92, %p93
      %p95 = scmp.ne.s32.totalorder %s81, %s82
      %p96 = scmp.eq.s32.totalorder %s22, 2
      %p97 = por %p95, %p96
      %p99 = scmp.ne.s32.totalorder %s82, %s98
      %p100 = scmp.eq.s32.totalorder %s22, 0
      %p101 = por %p99, %p100
      %s103 = sadd.s32 %s102, 1
      %p106 = scmp.eq.s32.totalorder %s16, 2
      %p107 = scmp.ne.s32.totalorder %s102, %s104
      %p108 = scmp.eq.s32.totalorder %s16, 0
      %p109 = por %p107, %p108
      %p110 = scmp.ne.s32.totalorder %s102, %s104
      %p111 = scmp.eq.s32.totalorder %s21, 2
      %p112 = por %p110, %p111
      %p113 = scmp.ne.s32.totalorder %s104, %s105
      %p114 = scmp.eq.s32.totalorder %s21, 0
      %p115 = por %p113, %p114
      %p116 = scmp.ne.s32.totalorder %s104, %s105
      %p117 = scmp.eq.s32.totalorder %s22, 2
      %p118 = por %p116, %p117
      %p120 = scmp.ne.s32.totalorder %s105, %s119
      %p121 = scmp.eq.s32.totalorder %s22, 0
      %p122 = por %p120, %p121
      %p123 = scmp.le.s32.totalorder 1, %s16
      %p124 = scmp.lt.s32.totalorder %s16, 4
      %p125 = pnand %p123, %p124
      %p126 = pneg %p125
      // Predicated region
      $region9: #{tpu_custom_call.1} parent=5 // pred_check
        _
      $region10: #{tpu_custom_call.1} parent=5 // pred_check_branch
        %128 = sbr.rel (%p125) target = $region12
      $region11: #{tpu_custom_call.1} parent=5 // pred_region
        %s129 = ssub.s32 %s16, 1
      $region12: #{tpu_custom_call.1} parent=5 // pred_fallthru
        _
      %p130 = scmp.lt.s32.totalorder %s16, 3
      // Predicated region
      $region13: #{tpu_custom_call.1} parent=5 // pred_check
        %p131 = pneg %p130
      $region14: #{tpu_custom_call.1} parent=5 // pred_check_branch
        %133 = sbr.rel (%p131) target = $region16
      $region15: #{tpu_custom_call.1} parent=5 // pred_region
        // Predicated region
        $region17: #{tpu_custom_call.1} parent=15 // pred_check
          %p134 = pneg %p36
        $region18: #{tpu_custom_call.1} parent=15 // pred_check_branch
          %136 = sbr.rel (%p134) target = $region20
        $region19: #{tpu_custom_call.1} parent=15 // pred_region
          %s137 = sand.u32 %s26, 1
          %s138 = scalar_lea.sflag [#allocation4], %s137
          %s139 = sand.u32 %s26, 1
          %s140 = smul.addr %s139, 8
          %s141 = scalar_lea.vmem [#allocation3], %s140
          %s143 = ssub.s32 128, 128
          %144 = vsyncadd %s138, %s143
          %s145 = smul.addr %s16, 128
          %s146 = scalar_lea.hbm %s0, %s145
          %s148 = sshll.u32 %s141, 4
          %s149 = int_to_ptr.vmem [resolvable:$true] %s148
          %151 = dma.hbm_to_vmem [thread:$0]  %s146, 128, %s149, %s138
        $region20: #{tpu_custom_call.1} parent=15 // pred_fallthru
          _
        // Predicated region
        $region21: #{tpu_custom_call.1} parent=15 // pred_check
          %p152 = pneg %p62
        $region22: #{tpu_custom_call.1} parent=15 // pred_check_branch
          %154 = sbr.rel (%p152) target = $region24
        $region23: #{tpu_custom_call.1} parent=15 // pred_region
          %s155 = sand.u32 %s16, 1
          %s156 = scalar_lea.sflag [#allocation7], %s155
          %s157 = sand.u32 %s52, 1
          %s158 = smul.addr %s157, 8
          %s159 = scalar_lea.vmem [#allocation6], %s158
          %s161 = ssub.s32 128, 128
          %162 = vsyncadd %s156, %s161
          %s163 = smul.addr %s16, 128
          %s164 = scalar_lea.hbm %s1, %s163
          %s166 = sshll.u32 %s159, 4
          %s167 = int_to_ptr.vmem [resolvable:$true] %s166
          %169 = dma.hbm_to_vmem [thread:$0]  %s164, 128, %s167, %s156
        $region24: #{tpu_custom_call.1} parent=15 // pred_fallthru
          _
        // Predicated region
        $region25: #{tpu_custom_call.1} parent=15 // pred_check
          %p170 = pneg %p88
        $region26: #{tpu_custom_call.1} parent=15 // pred_check_branch
          %172 = sbr.rel (%p170) target = $region28
        $region27: #{tpu_custom_call.1} parent=15 // pred_region
          %s173 = sand.u32 %s16, 1
          %s174 = scalar_lea.sflag [#allocation7], %s173
          %s175 = sand.u32 %s78, 1
          %s176 = smul.addr %s175, 8
          %s177 = scalar_lea.vmem [#allocation8], %s176
          %s179 = ssub.s32 128, 128
          %180 = vsyncadd %s174, %s179
          %s181 = smul.addr %s16, 128
          %s182 = scalar_lea.hbm %s2, %s181
          %s184 = sshll.u32 %s177, 4
          %s185 = int_to_ptr.vmem [resolvable:$true] %s184
          %187 = dma.hbm_to_vmem [thread:$0]  %s182, 128, %s185, %s174
        $region28: #{tpu_custom_call.1} parent=15 // pred_fallthru
          _
      $region16: #{tpu_custom_call.1} parent=5 // pred_fallthru
        _
      %p188 = scmp.le.s32.totalorder 1, %s16
      %p189 = scmp.lt.s32.totalorder %s16, 4
      %p190 = pnand %p188, %p189
      %p191 = pneg %p190
      // Predicated region
      $region29: #{tpu_custom_call.1} parent=5 // pred_check
        _
      $region30: #{tpu_custom_call.1} parent=5 // pred_check_branch
        %193 = sbr.rel (%p190) target = $region32
      $region31: #{tpu_custom_call.1} parent=5 // pred_region
        %s194 = ssub.s32 %s16, 1
        %s195 = sand.u32 %s29, 1
        %s196 = scalar_lea.sflag [#allocation4], %s195
        %s197 = sand.u32 %s29, 1
        %s198 = smul.addr %s197, 8
        %s199 = scalar_lea.vmem [#allocation3], %s198
        // Predicated region
        $region33: #{tpu_custom_call.1} parent=31 // pred_check
          %p200 = pneg %p42
        $region34: #{tpu_custom_call.1} parent=31 // pred_check_branch
          %202 = sbr.rel (%p200) target = $region36
        $region35: #{tpu_custom_call.1} parent=31 // pred_region
          %203 = dma.done %s196, 128
        $region36: #{tpu_custom_call.1} parent=31 // pred_fallthru
          _
        %s204 = sand.u32 %s21, 1
        %s205 = scalar_lea.sflag [#allocation7], %s204
        %s206 = sand.u32 %s55, 1
        %s207 = smul.addr %s206, 8
        %s208 = scalar_lea.vmem [#allocation6], %s207
        // Predicated region
        $region37: #{tpu_custom_call.1} parent=31 // pred_check
          %p209 = pneg %p68
        $region38: #{tpu_custom_call.1} parent=31 // pred_check_branch
          %211 = sbr.rel (%p209) target = $region40
        $region39: #{tpu_custom_call.1} parent=31 // pred_region
          %212 = dma.done %s205, 128
        $region40: #{tpu_custom_call.1} parent=31 // pred_fallthru
          _
        %s213 = sand.u32 %s21, 1
        %s214 = scalar_lea.sflag [#allocation7], %s213
        %s215 = sand.u32 %s81, 1
        %s216 = smul.addr %s215, 8
        %s217 = scalar_lea.vmem [#allocation8], %s216
        // Predicated region
        $region41: #{tpu_custom_call.1} parent=31 // pred_check
          %p218 = pneg %p94
        $region42: #{tpu_custom_call.1} parent=31 // pred_check_branch
          %220 = sbr.rel (%p218) target = $region44
        $region43: #{tpu_custom_call.1} parent=31 // pred_region
          %221 = dma.done %s214, 128
        $region44: #{tpu_custom_call.1} parent=31 // pred_fallthru
          _
        %s222 = sand.u32 %s29, 1
        %s223 = scalar_lea.sflag [#allocation4], %s222
        %s224 = sand.u32 %s29, 1
        %s225 = smul.addr %s224, 8
        %s226 = scalar_lea.vmem [#allocation3], %s225
        %p227 = pneg %p42
        %p228 = pneg %p39
        %s229 = sand.u32 %s21, 1
        %s230 = scalar_lea.sflag [#allocation7], %s229
        %s231 = sand.u32 %s55, 1
        %s232 = smul.addr %s231, 8
        %s233 = scalar_lea.vmem [#allocation6], %s232
        %p234 = pneg %p68
        %p235 = pneg %p65
        %s236 = sand.u32 %s21, 1
        %s237 = scalar_lea.sflag [#allocation7], %s236
        %s238 = sand.u32 %s81, 1
        %s239 = smul.addr %s238, 8
        %s240 = scalar_lea.vmem [#allocation8], %s239
        %p241 = pneg %p94
        %p242 = pneg %p91
        %p243 = pneg %p115
        %p244 = pneg %p112
        %p245 = scmp.eq.s32.totalorder %s21, 0
        // Predicated region
        $region45: #{tpu_custom_call.1} parent=31 // pred_check
          %p246 = pneg %p245
        $region46: #{tpu_custom_call.1} parent=31 // pred_check_branch
          %248 = sbr.rel (%p246) target = $region48
        $region47: #{tpu_custom_call.1} parent=31 // pred_region
          %s249 = scalar_lea.smem [#allocation2], 0
          %250 = sst [smem:[%s249]] 0.0
        $region48: #{tpu_custom_call.1} parent=31 // pred_fallthru
          _
        %v251 = vld [vmem:[%s199] sm:$0xff]
        %v252 = vld [vmem:[%s208] sm:$0xff]
        %v253 = vld [vmem:[%s217] sm:$0xff]
        %v254 = vsub.f32 %v251, %v252
        %v255 = vsub.f32 %v251, %v253
        %v256 = vmul.f32 %v254, %v254
        %vm257 = vcmask 261120
        %v258 = vsel %vm257, %v256, 0.0
        %259 = vadd.xlane.f32.xlu0 %v258
        %v260 = vpop.xlane.xlu0 %259
        %v261 = vmul.f32 %v255, %v255
        %v262 = vsel %vm257, %v261, 0.0
        %263 = vadd.xlane.f32.xlu0 %v262
        %v264 = vpop.xlane.xlu0 %263
        %v265 = vsub.f32 %v260, %v264
        %v266 = vadd.f32 %v265, 1.0
        %v267 = vmax.f32 %v266, 0.0
        %s268 = smul.u32 %s21, 8
        %v269 = vlaneseq
        %v270 = vshrl.u32 %v269, 7
        %v271 = vstv %s268
        %v272 = vadd.s32 %v271, %v270
        %vm273 = vcmp.lt.s32.totalorder %v272, 20
        %v274 = vsel %vm273, %v267, 0.0
        %s275 = sld [smem:[#allocation2]]
        %vm276 = vcmask 7168
        %v277 = vsel %vm276, %v274, 0.0
        %278 = vadd.xlane.f32.xlu0 %v277
        %v279 = vpop.xlane.xlu0 %278
        %v280 = vrot.slane %v279, 4
        %v281 = vadd.f32 %v279, %v280
        %v282 = vrot.slane %v281, 2
        %v283 = vadd.f32 %v281, %v282
        %v284 = vrot.slane %v283, 1
        %v285 = vadd.f32 %v283, %v284
        %s286 = vtos %v285
        %s287 = sadd.f32 %s275, %s286
        %s288 = scalar_lea.smem [#allocation2], 0
        %289 = sst [smem:[%s288]] %s287
        %p290 = scmp.eq.s32.totalorder %s21, 2
        // Predicated region
        $region49: #{tpu_custom_call.1} parent=31 // pred_check
          %p291 = pneg %p290
        $region50: #{tpu_custom_call.1} parent=31 // pred_check_branch
          %293 = sbr.rel (%p291) target = $region52
        $region51: #{tpu_custom_call.1} parent=31 // pred_region
          %s294 = sld [smem:[#allocation2]]
          %v295 = vrcp.pop 20.0
          %s296 = vtos %v295
          %s297 = smul.f32 %s294, %s296
          %s298 = scalar_lea.smem [#allocation9], 0
          %299 = sst [smem:[%s298]] %s297
        $region52: #{tpu_custom_call.1} parent=31 // pred_fallthru
          _
        // Predicated region
        $region53: #{tpu_custom_call.1} parent=31 // pred_check
          %p300 = pneg %p112
        $region54: #{tpu_custom_call.1} parent=31 // pred_check_branch
          %302 = sbr.rel (%p300) target = $region56
        $region55: #{tpu_custom_call.1} parent=31 // pred_region
          %s304 = ssub.s32 16, 16
          %305 = vsyncadd [#allocation5], %s304
          %308 = dma.smem_to_hbm [#allocation9], 16, %s3, [#allocation5]
        $region56: #{tpu_custom_call.1} parent=31 // pred_fallthru
          _
        // Predicated region
        $region57: #{tpu_custom_call.1} parent=31 // pred_check
          %p309 = pneg %p112
        $region58: #{tpu_custom_call.1} parent=31 // pred_check_branch
          %311 = sbr.rel (%p309) target = $region60
        $region59: #{tpu_custom_call.1} parent=31 // pred_region
          %312 = dma.done [#allocation5], 16
        $region60: #{tpu_custom_call.1} parent=31 // pred_fallthru
          _
        %313 = sfence
      $region32: #{tpu_custom_call.1} parent=5 // pred_fallthru
        _
      %p314 = scmp.le.s32.totalorder 2, %s16
      // Predicated region
      $region61: #{tpu_custom_call.1} parent=5 // pred_check
        %p315 = pneg %p314
      $region62: #{tpu_custom_call.1} parent=5 // pred_check_branch
        %317 = sbr.rel (%p315) target = $region64
      $region63: #{tpu_custom_call.1} parent=5 // pred_region
        %s318 = ssub.s32 %s16, 2
      $region64: #{tpu_custom_call.1} parent=5 // pred_fallthru
        _
    $region6: #{tpu_custom_call.1} parent=1 // loop_footer
      %s20 = sadd.s32 1, %s16
    $region7: #{tpu_custom_call.1} parent=1 // loop_footer_branch
      %15 = sbr.rel target = $region3
    $region8: #{tpu_custom_call.1} parent=1 // loop_exit
      _
    %319 = vsyncpa [#allocation4], 1
    %s320 = scalar_lea.sflag [#allocation4], 1
    %321 = vsyncpa %s320, 1
    %322 = vsyncpa [#allocation7], 1
    %s323 = scalar_lea.sflag [#allocation7], 1
    %324 = vsyncpa %s323, 1
    %325 = vsyncpa [#allocation5], 1
    %s326 = scalar_lea.sflag [#allocation5], 1
    %327 = vsyncpa %s326, 1

</llo_original>
